<compile_context>
chip_gen: v5e
topology: v5e:2x2
jax: 0.10.0
libtpu: 0.0.40
codegen_flags: <defaults>
</compile_context>

<pallas_src>
import functools

import jax
import jax.numpy as jnp
from jax import lax
from jax.experimental import pallas as pl
from jax.experimental.pallas import tpu as pltpu

STRONG_CONVEXITY = 1e-6
HIDDEN = (32, 32, 32)
LANE_CHUNK = 256  # inner per-chunk lane width (keeps the working set vreg-resident)


def _round_up(n, m):
    return ((n + m - 1) // m) * m


def _celu(z):
    # celu(z, alpha=1) = where(z > 0, z, exp(z) - 1)
    return jnp.where(z > 0, z, jnp.exp(z) - 1.0)


def icnn_w2_kernel(x_ref, w0_ref, w1_ref, w2_ref, b_ref, l1_ref, l2_ref, fw_ref, out_ref):
    H0, H1, H2 = HIDDEN
    tb = x_ref.shape[1]
    chunk = LANE_CHUNK if tb % LANE_CHUNK == 0 else 128   # tb is always a multiple of 128
    n_chunks = tb // chunk

    # Hoist all weight loads and bias broadcasts out of the lane-chunk loop
    # (broadcast_in_dim is not CSE'd across iterations).
    w0 = w0_ref[...]                      # (2*H0, A) bf16  rows = [Q0^T ; W0]
    w1 = w1_ref[...]                      # (2*H1, A) bf16
    w2 = w2_ref[...]                      # (2*H2, A) bf16
    l1 = l1_ref[...]                      # (H1, H0) bf16
    l2 = l2_ref[...]                      # (H2, H1) bf16
    fw = fw_ref[...]                      # (1,  H2) bf16
    b0 = jnp.broadcast_to(b_ref[0:H0], (H0, chunk))                       # f32
    b1 = jnp.broadcast_to(b_ref[H0:H0 + H1], (H1, chunk))
    b2 = jnp.broadcast_to(b_ref[H0 + H1:H0 + H1 + H2], (H2, chunk))

    def body(j, carry):
        off = pl.multiple_of(j * chunk, chunk)
        x = x_ref[:, pl.ds(off, chunk)]                                   # (A, C) bf16

        # ConvexQuadratic_0: one (2*H0, A)@(A, C) dot gives [x@Q0 ; x@W0^T], batch on lanes.
        z0 = jnp.dot(w0, x, preferred_element_type=jnp.float32)           # (2*H0, C) f32
        q0, lin0 = z0[:H0], z0[H0:]
        h = q0 * q0 + lin0 + b0                        # Dropout == identity in eval mode

        # convex_layers[0](h) + ConvexQuadratic_1(x), celu
        z1 = jnp.dot(w1, x, preferred_element_type=jnp.float32)
        q1, lin1 = z1[:H1], z1[H1:]
        h = _celu(jnp.dot(l1, h.astype(jnp.bfloat16), preferred_element_type=jnp.float32)
                  + q1 * q1 + lin1 + b1)

        # convex_layers[1](h) + ConvexQuadratic_2(x), celu
        z2 = jnp.dot(w2, x, preferred_element_type=jnp.float32)
        q2, lin2 = z2[:H2], z2[H2:]
        h = _celu(jnp.dot(l2, h.astype(jnp.bfloat16), preferred_element_type=jnp.float32)
                  + q2 * q2 + lin2 + b2)

        # 0.5 * eps * sum_a x_a^2 per batch column (f32 on the VPU).
        xf = x.astype(jnp.float32)
        reg = 0.5 * STRONG_CONVEXITY * jnp.sum(xf * xf, axis=0, keepdims=True)  # (1, C)

        # final_layer(h) + regularizer -> lane-dense (1, C) store (no masked vst).
        out_ref[:, pl.ds(off, chunk)] = (
            jnp.dot(fw, h.astype(jnp.bfloat16), preferred_element_type=jnp.float32) + reg)
        return carry

    lax.fori_loop(0, n_chunks, body, 0, unroll=True)


def _pick_tile(b_pad):
    # Largest multiple-of-128 tile <= 1024 dividing b_pad, preferring >= 2 grid steps
    # so v7x's two TensorCores both get work ("parallel" axis).
    cands = [t for t in range(128, 1025, 128) if b_pad % t == 0]
    multi = [t for t in cands if b_pad // t >= 2]
    return max(multi) if multi else max(cands)


@functools.partial(jax.jit, static_argnames=("tile_b",))
def icnn_w2_forward(agent_qs, params, states=None, *, tile_b=None):
    """agent_qs: (B, A) f32.  params: PyTorch-shaped weights (see init_params).
    `states` is accepted for signature parity with the PyTorch module but unused."""
    del states
    x = agent_qs
    B, A = x.shape
    H0, H1, H2 = HIDDEN

    if tile_b is None:
        B_pad = _round_up(B, 128)
        tile_b = _pick_tile(B_pad)
    else:
        assert tile_b % 128 == 0
        B_pad = _round_up(B, tile_b)

    # Batch-on-lanes layout in bf16 (halves input HBM/DMA bytes; f32 accumulate in-kernel).
    # The pad + cast + transpose is allowed to fuse into the pallas_call input DMA.
    x_t = jnp.pad(x, ((0, B_pad - B), (0, 0))).astype(jnp.bfloat16).T        # (A, B_pad)

    def layer_w(q, w):
        # rows = [Q_k^T ; W_k]  ->  (2*H_k, A) bf16  (one dot gives both quad and lin parts)
        return jnp.concatenate([q.T, w], axis=0).astype(jnp.bfloat16)

    w0 = layer_w(params["q0"], params["w0"])
    w1 = layer_w(params["q1"], params["w1"])
    w2 = layer_w(params["q2"], params["w2"])
    b_all = jnp.concatenate([params["b0"], params["b1"], params["b2"]])
    b_all = b_all.reshape(-1, 1).astype(jnp.float32)                          # (H0+H1+H2, 1)
    l1 = params["l1"].astype(jnp.bfloat16)
    l2 = params["l2"].astype(jnp.bfloat16)
    fw = params["final"].astype(jnp.bfloat16)

    full = lambda shape: pl.BlockSpec(shape, lambda i: (0, 0))

    out_t = pl.pallas_call(
        icnn_w2_kernel,
        out_shape=jax.ShapeDtypeStruct((1, B_pad), jnp.float32),
        grid_spec=pltpu.PrefetchScalarGridSpec(
            num_scalar_prefetch=0,
            grid=(B_pad // tile_b,),
            in_specs=[
                pl.BlockSpec((A, tile_b), lambda i: (0, i)),   # x^T, tiled over batch lanes
                full((2 * H0, A)),                             # [Q0^T ; W0]
                full((2 * H1, A)),                             # [Q1^T ; W1]
                full((2 * H2, A)),                             # [Q2^T ; W2]
                full((H0 + H1 + H2, 1)),                       # biases (column)
                full((H1, H0)),                                # convex layer 1 weight
                full((H2, H1)),                                # convex layer 2 weight
                full((1, H2)),                                 # final layer weight
            ],
            out_specs=pl.BlockSpec((1, tile_b), lambda i: (0, i)),  # lane-dense output slab
        ),
        compiler_params=pltpu.CompilerParams(
            dimension_semantics=("parallel",),                 # shard batch tiles over TCs
            allow_input_fusion=[True] + [False] * 7,           # fuse x pad/cast/T into DMA
        ),
    )(x_t, w0, w1, w2, b_all, l1, l2, fw)

    # TODO(synk): drop this final (B, 1) transpose if the consumer can accept (1, B).
    return out_t[:, :B].T


def icnn_w2_reference(x, params):
    """Pure-JAX fp32 reference mirroring the PyTorch forward (eval mode)."""
    def cq(q, w, b):
        return jnp.square(x @ q) + x @ w.T + b

    h = cq(params["q0"], params["w0"], params["b0"])
    h = _celu(h @ params["l1"].T + cq(params["q1"], params["w1"], params["b1"]))
    h = _celu(h @ params["l2"].T + cq(params["q2"], params["w2"], params["b2"]))
    reg = 0.5 * STRONG_CONVEXITY * jnp.sum(x * x, axis=1, keepdims=True)
    return h @ params["final"].T + reg


def icnn_w2_reference_bf16(x, params):
    """Precision-matched reference: bf16 matmul operands, f32 accumulation and
    f32 elementwise math — exactly the kernel's numerics."""
    bf, f32 = jnp.bfloat16, jnp.float32
    xb = x.astype(bf)
    mm = lambda a, b: jnp.dot(a.astype(bf), b.astype(bf), preferred_element_type=f32)

    def cq(q, w, b):
        return jnp.square(mm(xb, q)) + mm(xb, w.T) + b

    h = cq(params["q0"], params["w0"], params["b0"])
    h = _celu(mm(h, params["l1"].T) + cq(params["q1"], params["w1"], params["b1"]))
    h = _celu(mm(h, params["l2"].T) + cq(params["q2"], params["w2"], params["b2"]))
    xf = xb.astype(f32)
    reg = 0.5 * STRONG_CONVEXITY * jnp.sum(xf * xf, axis=1, keepdims=True)
    return mm(h, params["final"].T) + reg


def init_params(key, n_agents):
    """Synthetic params with PyTorch-native shapes.

    ConvexQuadratic_k (rank=1): quadratic factor q_k (A, H_k), weight (H_k, A), bias (H_k,)
    convex_layers: Linear(H_{k-1}, H_k, bias=False) -> weight (H_k, H_{k-1})
    final_layer:   Linear(H_2, 1, bias=False)       -> weight (1, H_2)
    """
    A = n_agents
    H0, H1, H2 = HIDDEN
    ks = jax.random.split(key, 12)
    return {
        "q0": jax.random.normal(ks[0], (A, H0), jnp.float32),
        "w0": jax.random.normal(ks[1], (H0, A), jnp.float32),
        "b0": jax.random.normal(ks[2], (H0,), jnp.float32),
        "q1": jax.random.normal(ks[3], (A, H1), jnp.float32),
        "w1": jax.random.normal(ks[4], (H1, A), jnp.float32),
        "b1": jax.random.normal(ks[5], (H1,), jnp.float32),
        "q2": jax.random.normal(ks[6], (A, H2), jnp.float32),
        "w2": jax.random.normal(ks[7], (H2, A), jnp.float32),
        "b2": jax.random.normal(ks[8], (H2,), jnp.float32),
        # scale the convex linear layers down a bit so celu doesn't saturate
        "l1": 0.1 * jax.random.normal(ks[9], (H1, H0), jnp.float32),
        "l2": 0.1 * jax.random.normal(ks[10], (H2, H1), jnp.float32),
        "final": jax.random.normal(ks[11], (1, H2), jnp.float32),
    }


def _check(out, ref32, refbf, name):
    # Structural check against a precision-matched (bf16-MXU) reference: tight.
    assert jnp.allclose(out, refbf, rtol=1e-2, atol=1e-2), (name, "bf16-matched mismatch")
    # Semantic check against the fp32 PyTorch-equivalent reference: bf16-MXU tolerance.
    err = float(jnp.max(jnp.abs(out - ref32)))
    scale = float(jnp.max(jnp.abs(ref32)))
    assert err <= 0.05 * scale + 0.5, (name, err, scale)


if __name__ == "__main__":
    key = jax.random.PRNGKey(0)
    k_param, k1, k2, k3 = jax.random.split(key, 4)
    n_agents = 4
    params = init_params(k_param, n_agents)

    # case 1: single 128-lane tile (batch 16 -> padded to 128).
    x1 = jax.random.normal(k1, (16, n_agents), jnp.float32)
    o1 = jax.block_until_ready(icnn_w2_forward(x1, params))
    assert o1.shape == (16, 1)
    _check(o1, icnn_w2_reference(x1, params), icnn_w2_reference_bf16(x1, params), "b=16")

    # case 2: batch padding + 2-step grid (200 -> 256 = 2 x 128-lane tiles).
    x2 = jax.random.normal(k2, (200, n_agents), jnp.float32)
    o2 = jax.block_until_ready(icnn_w2_forward(x2, params))
    assert o2.shape == (200, 1)
    _check(o2, icnn_w2_reference(x2, params), icnn_w2_reference_bf16(x2, params), "b=200")

    # case 3: exercises the inner 256-lane chunk loop (1000 -> 1024, tile_b=512, 2 steps).
    x3 = jax.random.normal(k3, (1000, n_agents), jnp.float32)
    o3 = jax.block_until_ready(icnn_w2_forward(x3, params))
    assert o3.shape == (1000, 1)
    _check(o3, icnn_w2_reference(x3, params), icnn_w2_reference_bf16(x3, params), "b=1000")

    print("KERNEL_OK")
</pallas_src>

<mosaic_0001>
module attributes {stable_mosaic.version = 11 : i64} {
  func.func @icnn_w2_kernel(%arg0: i32, %arg1: memref<4x128xbf16, #tpu.memory_space<vmem>>, %arg2: memref<64x4xbf16, #tpu.memory_space<vmem>>, %arg3: memref<64x4xbf16, #tpu.memory_space<vmem>>, %arg4: memref<64x4xbf16, #tpu.memory_space<vmem>>, %arg5: memref<96x1xf32, #tpu.memory_space<vmem>>, %arg6: memref<32x32xbf16, #tpu.memory_space<vmem>>, %arg7: memref<32x32xbf16, #tpu.memory_space<vmem>>, %arg8: memref<1x32xbf16, #tpu.memory_space<vmem>>, %arg9: memref<1x128xf32, #tpu.memory_space<vmem>>) attributes {dimension_semantics = [#tpu.dimension_semantics<parallel>], iteration_bounds = array<i64: 1>, scalar_prefetch = 0 : i64, scratch_operands = 0 : i64, tpu.core_type = #tpu.core_type<tc>, window_params = [{transform_indices = @transform_0, window_bounds = array<i64: 4, 128>}, {pipeline_mode = #tpu.pipeline_mode<synchronous>, transform_indices = @transform_1, window_bounds = array<i64: 64, 4>}, {pipeline_mode = #tpu.pipeline_mode<synchronous>, transform_indices = @transform_2, window_bounds = array<i64: 64, 4>}, {pipeline_mode = #tpu.pipeline_mode<synchronous>, transform_indices = @transform_3, window_bounds = array<i64: 64, 4>}, {pipeline_mode = #tpu.pipeline_mode<synchronous>, transform_indices = @transform_4, window_bounds = array<i64: 96, 1>}, {pipeline_mode = #tpu.pipeline_mode<synchronous>, transform_indices = @transform_5, window_bounds = array<i64: 32, 32>}, {pipeline_mode = #tpu.pipeline_mode<synchronous>, transform_indices = @transform_6, window_bounds = array<i64: 32, 32>}, {pipeline_mode = #tpu.pipeline_mode<synchronous>, transform_indices = @transform_7, window_bounds = array<i64: 1, 32>}, {transform_indices = @transform_8, window_bounds = array<i64: 1, 128>}]} {
    %c0 = arith.constant 0 : index
    %c0_0 = arith.constant 0 : index
    %0 = vector.load %arg2[%c0, %c0_0] : memref<64x4xbf16, #tpu.memory_space<vmem>>, vector<64x4xbf16>
    %c0_1 = arith.constant 0 : index
    %c0_2 = arith.constant 0 : index
    %1 = vector.load %arg3[%c0_1, %c0_2] : memref<64x4xbf16, #tpu.memory_space<vmem>>, vector<64x4xbf16>
    %c0_3 = arith.constant 0 : index
    %c0_4 = arith.constant 0 : index
    %2 = vector.load %arg4[%c0_3, %c0_4] : memref<64x4xbf16, #tpu.memory_space<vmem>>, vector<64x4xbf16>
    %c0_5 = arith.constant 0 : index
    %c0_6 = arith.constant 0 : index
    %3 = vector.load %arg6[%c0_5, %c0_6] : memref<32x32xbf16, #tpu.memory_space<vmem>>, vector<32x32xbf16>
    %c0_7 = arith.constant 0 : index
    %c0_8 = arith.constant 0 : index
    %4 = vector.load %arg7[%c0_7, %c0_8] : memref<32x32xbf16, #tpu.memory_space<vmem>>, vector<32x32xbf16>
    %c0_9 = arith.constant 0 : index
    %c0_10 = arith.constant 0 : index
    %5 = vector.load %arg8[%c0_9, %c0_10] : memref<1x32xbf16, #tpu.memory_space<vmem>>, vector<1x32xbf16>
    %c0_11 = arith.constant 0 : index
    %c0_12 = arith.constant 0 : index
    %6 = vector.load %arg5[%c0_11, %c0_12] : memref<96x1xf32, #tpu.memory_space<vmem>>, vector<32x1xf32>
    %7 = vector.shape_cast %6 : vector<32x1xf32> to vector<32x1xf32>
    %8 = vector.broadcast %7 : vector<32x1xf32> to vector<32x128xf32>
    %c32 = arith.constant 32 : index
    %c0_13 = arith.constant 0 : index
    %9 = vector.load %arg5[%c32, %c0_13] : memref<96x1xf32, #tpu.memory_space<vmem>>, vector<32x1xf32>
    %10 = vector.shape_cast %9 : vector<32x1xf32> to vector<32x1xf32>
    %11 = vector.broadcast %10 : vector<32x1xf32> to vector<32x128xf32>
    %c64 = arith.constant 64 : index
    %c0_14 = arith.constant 0 : index
    %12 = vector.load %arg5[%c64, %c0_14] : memref<96x1xf32, #tpu.memory_space<vmem>>, vector<32x1xf32>
    %13 = vector.shape_cast %12 : vector<32x1xf32> to vector<32x1xf32>
    %14 = vector.broadcast %13 : vector<32x1xf32> to vector<32x128xf32>
    %c0_i32 = arith.constant 0 : i32
    %c128_i32 = arith.constant 128 : i32
    %15 = arith.muli %c0_i32, %c128_i32 : i32
    %16 = tpu.assume_multiple %15, 128 : i32
    %c0_15 = arith.constant 0 : index
    %17 = arith.index_cast %16 : i32 to index
    %18 = vector.load %arg1[%c0_15, %17] : memref<4x128xbf16, #tpu.memory_space<vmem>>, vector<4x128xbf16>
    %cst = arith.constant dense<0.000000e+00> : vector<64x128xf32>
    %19 = tpu.matmul %0, %18, %cst {dimension_numbers = #tpu.dot_dimension_numbers<[1], [0], [0], [1], [0, 0, 1, 1], [], []>} : vector<64x4xbf16>, vector<4x128xbf16>, vector<64x128xf32> -> vector<64x128xf32>
    %20 = vector.extract_strided_slice %19 {offsets = [0, 0], sizes = [32, 128], strides = [1, 1]} : vector<64x128xf32> to vector<32x128xf32>
    %21 = vector.extract_strided_slice %19 {offsets = [32, 0], sizes = [32, 128], strides = [1, 1]} : vector<64x128xf32> to vector<32x128xf32>
    %22 = arith.mulf %20, %20 : vector<32x128xf32>
    %23 = arith.addf %22, %21 : vector<32x128xf32>
    %24 = arith.addf %23, %8 : vector<32x128xf32>
    %cst_16 = arith.constant dense<0.000000e+00> : vector<64x128xf32>
    %25 = tpu.matmul %1, %18, %cst_16 {dimension_numbers = #tpu.dot_dimension_numbers<[1], [0], [0], [1], [0, 0, 1, 1], [], []>} : vector<64x4xbf16>, vector<4x128xbf16>, vector<64x128xf32> -> vector<64x128xf32>
    %26 = vector.extract_strided_slice %25 {offsets = [0, 0], sizes = [32, 128], strides = [1, 1]} : vector<64x128xf32> to vector<32x128xf32>
    %27 = vector.extract_strided_slice %25 {offsets = [32, 0], sizes = [32, 128], strides = [1, 1]} : vector<64x128xf32> to vector<32x128xf32>
    %28 = arith.truncf %24 : vector<32x128xf32> to vector<32x128xbf16>
    %cst_17 = arith.constant dense<0.000000e+00> : vector<32x128xf32>
    %29 = tpu.matmul %3, %28, %cst_17 {dimension_numbers = #tpu.dot_dimension_numbers<[1], [0], [0], [1], [0, 0, 1, 1], [], []>} : vector<32x32xbf16>, vector<32x128xbf16>, vector<32x128xf32> -> vector<32x128xf32>
    %30 = arith.mulf %26, %26 : vector<32x128xf32>
    %31 = arith.addf %29, %30 : vector<32x128xf32>
    %32 = arith.addf %31, %27 : vector<32x128xf32>
    %33 = arith.addf %32, %11 : vector<32x128xf32>
    %cst_18 = arith.constant 0.000000e+00 : f32
    %34 = vector.broadcast %cst_18 : f32 to vector<32x128xf32>
    %35 = arith.cmpf ogt, %33, %34 : vector<32x128xf32>
    %36 = math.exp %33 : vector<32x128xf32>
    %cst_19 = arith.constant 1.000000e+00 : f32
    %37 = vector.broadcast %cst_19 : f32 to vector<32x128xf32>
    %38 = arith.subf %36, %37 : vector<32x128xf32>
    %39 = arith.select %35, %33, %38 : vector<32x128xi1>, vector<32x128xf32>
    %cst_20 = arith.constant dense<0.000000e+00> : vector<64x128xf32>
    %40 = tpu.matmul %2, %18, %cst_20 {dimension_numbers = #tpu.dot_dimension_numbers<[1], [0], [0], [1], [0, 0, 1, 1], [], []>} : vector<64x4xbf16>, vector<4x128xbf16>, vector<64x128xf32> -> vector<64x128xf32>
    %41 = vector.extract_strided_slice %40 {offsets = [0, 0], sizes = [32, 128], strides = [1, 1]} : vector<64x128xf32> to vector<32x128xf32>
    %42 = vector.extract_strided_slice %40 {offsets = [32, 0], sizes = [32, 128], strides = [1, 1]} : vector<64x128xf32> to vector<32x128xf32>
    %43 = arith.truncf %39 : vector<32x128xf32> to vector<32x128xbf16>
    %cst_21 = arith.constant dense<0.000000e+00> : vector<32x128xf32>
    %44 = tpu.matmul %4, %43, %cst_21 {dimension_numbers = #tpu.dot_dimension_numbers<[1], [0], [0], [1], [0, 0, 1, 1], [], []>} : vector<32x32xbf16>, vector<32x128xbf16>, vector<32x128xf32> -> vector<32x128xf32>
    %45 = arith.mulf %41, %41 : vector<32x128xf32>
    %46 = arith.addf %44, %45 : vector<32x128xf32>
    %47 = arith.addf %46, %42 : vector<32x128xf32>
    %48 = arith.addf %47, %14 : vector<32x128xf32>
    %cst_22 = arith.constant 0.000000e+00 : f32
    %49 = vector.broadcast %cst_22 : f32 to vector<32x128xf32>
    %50 = arith.cmpf ogt, %48, %49 : vector<32x128xf32>
    %51 = math.exp %48 : vector<32x128xf32>
    %cst_23 = arith.constant 1.000000e+00 : f32
    %52 = vector.broadcast %cst_23 : f32 to vector<32x128xf32>
    %53 = arith.subf %51, %52 : vector<32x128xf32>
    %54 = arith.select %50, %48, %53 : vector<32x128xi1>, vector<32x128xf32>
    %55 = arith.extf %18 : vector<4x128xbf16> to vector<4x128xf32>
    %56 = arith.mulf %55, %55 : vector<4x128xf32>
    %cst_24 = arith.constant dense<0.000000e+00> : vector<128xf32>
    %57 = vector.multi_reduction <add>, %56, %cst_24 [0] : vector<4x128xf32> to vector<128xf32>
    %58 = vector.shape_cast %57 : vector<128xf32> to vector<1x128xf32>
    %cst_25 = arith.constant 5.000000e-07 : f32
    %59 = vector.broadcast %cst_25 : f32 to vector<1x128xf32>
    %60 = arith.mulf %59, %58 : vector<1x128xf32>
    %61 = arith.truncf %54 : vector<32x128xf32> to vector<32x128xbf16>
    %cst_26 = arith.constant dense<0.000000e+00> : vector<1x128xf32>
    %62 = tpu.matmul %5, %61, %cst_26 {dimension_numbers = #tpu.dot_dimension_numbers<[1], [0], [0], [1], [0, 0, 1, 1], [], []>} : vector<1x32xbf16>, vector<32x128xbf16>, vector<1x128xf32> -> vector<1x128xf32>
    %63 = arith.addf %62, %60 : vector<1x128xf32>
    %c0_27 = arith.constant 0 : index
    %64 = arith.index_cast %16 : i32 to index
    %65 = vector.load %arg9[%c0_27, %64] : memref<1x128xf32, #tpu.memory_space<vmem>>, vector<1x128xf32>
    tpu.vector_store %arg9[%c0_27, %64], %63 {strides = array<i32>} : memref<1x128xf32, #tpu.memory_space<vmem>>, vector<1x128xf32>,
    %c1_i32 = arith.constant 1 : i32
    return
  }
  func.func @transform_0(%arg0: i32) -> (i32, i32) {
    %c0_i32 = arith.constant 0 : i32
    %c0_i32_0 = arith.constant 0 : i32
    return %c0_i32, %arg0 : i32, i32
  }
  func.func @transform_1(%arg0: i32) -> (i32, i32) {
    %c0_i32 = arith.constant 0 : i32
    %c0_i32_0 = arith.constant 0 : i32
    %c0_i32_1 = arith.constant 0 : i32
    return %c0_i32, %c0_i32_0 : i32, i32
  }
  func.func @transform_2(%arg0: i32) -> (i32, i32) {
    %c0_i32 = arith.constant 0 : i32
    %c0_i32_0 = arith.constant 0 : i32
    %c0_i32_1 = arith.constant 0 : i32
    return %c0_i32, %c0_i32_0 : i32, i32
  }
  func.func @transform_3(%arg0: i32) -> (i32, i32) {
    %c0_i32 = arith.constant 0 : i32
    %c0_i32_0 = arith.constant 0 : i32
    %c0_i32_1 = arith.constant 0 : i32
    return %c0_i32, %c0_i32_0 : i32, i32
  }
  func.func @transform_4(%arg0: i32) -> (i32, i32) {
    %c0_i32 = arith.constant 0 : i32
    %c0_i32_0 = arith.constant 0 : i32
    %c0_i32_1 = arith.constant 0 : i32
    return %c0_i32, %c0_i32_0 : i32, i32
  }
  func.func @transform_5(%arg0: i32) -> (i32, i32) {
    %c0_i32 = arith.constant 0 : i32
    %c0_i32_0 = arith.constant 0 : i32
    %c0_i32_1 = arith.constant 0 : i32
    return %c0_i32, %c0_i32_0 : i32, i32
  }
  func.func @transform_6(%arg0: i32) -> (i32, i32) {
    %c0_i32 = arith.constant 0 : i32
    %c0_i32_0 = arith.constant 0 : i32
    %c0_i32_1 = arith.constant 0 : i32
    return %c0_i32, %c0_i32_0 : i32, i32
  }
  func.func @transform_7(%arg0: i32) -> (i32, i32) {
    %c0_i32 = arith.constant 0 : i32
    %c0_i32_0 = arith.constant 0 : i32
    %c0_i32_1 = arith.constant 0 : i32
    return %c0_i32, %c0_i32_0 : i32, i32
  }
  func.func @transform_8(%arg0: i32) -> (i32, i32) {
    %c0_i32 = arith.constant 0 : i32
    %c0_i32_0 = arith.constant 0 : i32
    return %c0_i32, %arg0 : i32, i32
  }
}

</mosaic_0001>

<llo_original>
// kernel: icnn_w2_forward.2
$region0: #{icnn_w2_forward.2}
  #allocation0 [shape = 'u32[]', space=smem, size = 0x4, offset = 0x4, fixed_abs, tag = 'smem constant byte address 0x4 - core index']
  #allocation1 [shape = 'u32[72,128]{1,0:T(1,128)}', space=vmem, size = 0x9000, scoped, tag = 'internal scratch']
  #allocation2 [shape = 'u32[2048]{0}', space=vmem, size = 0x2000, scoped, tag = 'scoped memory for icnn_w2_forward.2']
  #allocation3 [shape = 'u32[2048]{0}', space=vmem, size = 0x2000, scoped, tag = 'scoped memory for icnn_w2_forward.2']
  #allocation4 [shape = 'u32[2048]{0}', space=vmem, size = 0x2000, scoped, tag = 'scoped memory for icnn_w2_forward.2']
  #allocation5 [shape = 'u32[2048]{0}', space=vmem, size = 0x2000, scoped, tag = 'scoped memory for icnn_w2_forward.2']
  #allocation6 [shape = 'u32[2048]{0}', space=vmem, size = 0x2000, scoped, tag = 'scoped memory for icnn_w2_forward.2']
  %s0 = inlined_call_operand.vmem [shape: bf16[64,4], index: 0, kind: input, shape index: {}]
  %s1 = inlined_call_operand.vmem [shape: bf16[64,4], index: 1, kind: input, shape index: {}]
  %s2 = inlined_call_operand.vmem [shape: bf16[64,4], index: 2, kind: input, shape index: {}]
  %s3 = inlined_call_operand.vmem [shape: f32[96,1], index: 3, kind: input, shape index: {}]
  %s4 = inlined_call_operand.vmem [shape: bf16[32,32], index: 4, kind: input, shape index: {}]
  %s5 = inlined_call_operand.vmem [shape: bf16[32,32], index: 5, kind: input, shape index: {}]
  %s6 = inlined_call_operand.vmem [shape: bf16[1,32], index: 6, kind: input, shape index: {}]
  %s7 = inlined_call_operand.vmem [shape: bf16[16,4], index: 7, kind: input, shape index: {}]
  %s8 = inlined_call_operand.<no memory space> [shape: bf16[], index: 8, kind: input, shape index: {}]
  %s9 = inlined_call_operand.vmem [shape: f32[1,128], index: 9, kind: output, shape index: {}]
  %s10 = sld [smem:[#allocation0]]
  $region42: #{icnn_w2_forward.2} parent=0
    _
  %s12 = ssub.s32 1, %s10
  %s13 = scalar_select 0, %s12, %s10
  %v14 = vstv %s8
  %v15 = vunpack.i.l.bf16 %v14
  %v17 = vunpack.i.h.bf16 %v14
  $region1: #{icnn_w2_forward.2} parent=0
    #allocation7 [shape = 'u8[1024]{0}', space=vmem, size = 0x400, dematerialized = true, scoped, tag = 'FusionAdapter Buffer %fusion.1 = bf16[4,128]{1,0:T(4,128)(2,1)} fusion(%param_7.2, %param_8), kind=kLoop, calls=%fused_computation.4.clone, metadata={op_name="jit(icnn_w2_forward)/transpose" stack_frame_id=8}']
    // Predicated region
    $region2: #{icnn_w2_forward.2} parent=1 // pred_check
      _
    $region3: #{icnn_w2_forward.2} parent=1 // pred_check_branch
      %20 = sbr.rel (0) target = $region5
    $region4: #{icnn_w2_forward.2} parent=1 // pred_region
      _
    $region5: #{icnn_w2_forward.2} parent=1 // pred_fallthru
      _
    // Predicated region
    $region6: #{icnn_w2_forward.2} parent=1 // pred_check
      _
    $region7: #{icnn_w2_forward.2} parent=1 // pred_check_branch
      %22 = sbr.rel (0) target = $region9
    $region8: #{icnn_w2_forward.2} parent=1 // pred_region
      _
    $region9: #{icnn_w2_forward.2} parent=1 // pred_fallthru
      _
    // Predicated region
    $region10: #{icnn_w2_forward.2} parent=1 // pred_check
      _
    $region11: #{icnn_w2_forward.2} parent=1 // pred_check_branch
      %24 = sbr.rel (0) target = $region13
    $region12: #{icnn_w2_forward.2} parent=1 // pred_region
      _
    $region13: #{icnn_w2_forward.2} parent=1 // pred_fallthru
      _
    // Predicated region
    $region14: #{icnn_w2_forward.2} parent=1 // pred_check
      _
    $region15: #{icnn_w2_forward.2} parent=1 // pred_check_branch
      %26 = sbr.rel (0) target = $region17
    $region16: #{icnn_w2_forward.2} parent=1 // pred_region
      _
    $region17: #{icnn_w2_forward.2} parent=1 // pred_fallthru
      _
    // Predicated region
    $region18: #{icnn_w2_forward.2} parent=1 // pred_check
      _
    $region19: #{icnn_w2_forward.2} parent=1 // pred_check_branch
      %28 = sbr.rel (0) target = $region21
    $region20: #{icnn_w2_forward.2} parent=1 // pred_region
      _
    $region21: #{icnn_w2_forward.2} parent=1 // pred_fallthru
      _
    // Predicated region
    $region22: #{icnn_w2_forward.2} parent=1 // pred_check
      _
    $region23: #{icnn_w2_forward.2} parent=1 // pred_check_branch
      %30 = sbr.rel (0) target = $region25
    $region24: #{icnn_w2_forward.2} parent=1 // pred_region
      _
    $region25: #{icnn_w2_forward.2} parent=1 // pred_fallthru
      _
    // Predicated region
    $region26: #{icnn_w2_forward.2} parent=1 // pred_check
      _
    $region27: #{icnn_w2_forward.2} parent=1 // pred_check_branch
      %32 = sbr.rel (0) target = $region29
    $region28: #{icnn_w2_forward.2} parent=1 // pred_region
      _
    $region29: #{icnn_w2_forward.2} parent=1 // pred_fallthru
      _
    // Predicated region
    $region30: #{icnn_w2_forward.2} parent=1 // pred_check
      _
    $region31: #{icnn_w2_forward.2} parent=1 // pred_check_branch
      %34 = sbr.rel (0) target = $region33
    $region32: #{icnn_w2_forward.2} parent=1 // pred_region
      _
    $region33: #{icnn_w2_forward.2} parent=1 // pred_fallthru
      _
    %s36 = sor.u32 15, 7
    %s37 = sand.u32 %s36, 5
    %s38 = sshrl.u32 %s37, 1
    %s39 = sor.u32 %s37, %s38
    %s40 = sand.u32 3, %s39
    %v41 = vld [vmem:[%s7] sm:%s40]
    %v42 = vunpack.c.l.bf16 %v41
    %v43 = vunpack.c.h.bf16 %v41
    %v44 = vlaneseq
    %v45 = vshrl.u32 %v44, 7
    %vm47 = vcmp.lt.s32.totalorder %v45, 4
    %v48 = vsel %vm47, %v42, %v15
    %v49 = vlaneseq
    %v50 = vand.u32 %v49, 127
    %vm52 = vcmp.lt.s32.totalorder %v50, 16
    %v53 = vsel %vm52, %v48, %v15
    %v54 = vpack.c.bf16 0.0, %v53
    %s56 = ssub.s32 4, 1
    %57 = vst [vmem:[#allocation7] sm:%s56] %v54
    %v59 = vld [vmem:[%s0] sm:$0xf]
    %v60 = vld [vmem:[%s0 + $0x4] sm:$0xf]
    %v61 = vld [vmem:[%s0 + $0x8] sm:$0xf]
    %v62 = vld [vmem:[%s0 + $0xc] sm:$0xf]
    %v63 = vld [vmem:[%s0 + $0x10] sm:$0xf]
    %v64 = vld [vmem:[%s0 + $0x14] sm:$0xf]
    %v65 = vld [vmem:[%s0 + $0x18] sm:$0xf]
    %v66 = vld [vmem:[%s0 + $0x1c] sm:$0xf]
    %v67 = vld [vmem:[%s1] sm:$0xf]
    %v68 = vld [vmem:[%s1 + $0x4] sm:$0xf]
    %v69 = vld [vmem:[%s1 + $0x8] sm:$0xf]
    %v70 = vld [vmem:[%s1 + $0xc] sm:$0xf]
    %v71 = vld [vmem:[%s1 + $0x10] sm:$0xf]
    %v72 = vld [vmem:[%s1 + $0x14] sm:$0xf]
    %v73 = vld [vmem:[%s1 + $0x18] sm:$0xf]
    %v74 = vld [vmem:[%s1 + $0x1c] sm:$0xf]
    %v75 = vld [vmem:[%s2] sm:$0xf]
    %v76 = vld [vmem:[%s2 + $0x4] sm:$0xf]
    %v77 = vld [vmem:[%s2 + $0x8] sm:$0xf]
    %v78 = vld [vmem:[%s2 + $0xc] sm:$0xf]
    %v79 = vld [vmem:[%s2 + $0x10] sm:$0xf]
    %v80 = vld [vmem:[%s2 + $0x14] sm:$0xf]
    %v81 = vld [vmem:[%s2 + $0x18] sm:$0xf]
    %v82 = vld [vmem:[%s2 + $0x1c] sm:$0xf]
    %v83 = vld [vmem:[%s4] sm:$0xf]
    %v84 = vld [vmem:[%s4 + $0x4] sm:$0xf]
    %v85 = vld [vmem:[%s4 + $0x8] sm:$0xf]
    %v86 = vld [vmem:[%s4 + $0xc] sm:$0xf]
    %v87 = vld [vmem:[%s5] sm:$0xf]
    %v88 = vld [vmem:[%s5 + $0x4] sm:$0xf]
    %v89 = vld [vmem:[%s5 + $0x8] sm:$0xf]
    %v90 = vld [vmem:[%s5 + $0xc] sm:$0xf]
    %v91 = vld [vmem:[%s6] sm:$0x1]
    %v92 = vld [vmem:[%s3] sm:$0xff]
    %v93 = vld [vmem:[%s3 + $0x8] sm:$0xff]
    %v94 = vld [vmem:[%s3 + $0x10] sm:$0xff]
    %v95 = vld [vmem:[%s3 + $0x18] sm:$0xff]
    %97 = vset.pattern.permute.xlu0 0
    %98 = vperm.xlu0 %97, %v92
    %v99 = vpop.permute.xlu0 %98
    %102 = vset.pattern.permute.xlu0 0
    %103 = vperm.xlu0 %102, %v93
    %v104 = vpop.permute.xlu0 %103
    %107 = vset.pattern.permute.xlu0 0
    %108 = vperm.xlu0 %107, %v94
    %v109 = vpop.permute.xlu0 %108
    %112 = vset.pattern.permute.xlu0 0
    %113 = vperm.xlu0 %112, %v95
    %v114 = vpop.permute.xlu0 %113
    %v116 = vld [vmem:[%s3 + $0x20] sm:$0xff]
    %v117 = vld [vmem:[%s3 + $0x28] sm:$0xff]
    %v118 = vld [vmem:[%s3 + $0x30] sm:$0xff]
    %v119 = vld [vmem:[%s3 + $0x38] sm:$0xff]
    %121 = vset.pattern.permute.xlu0 0
    %122 = vperm.xlu0 %121, %v116
    %v123 = vpop.permute.xlu0 %122
    %126 = vset.pattern.permute.xlu0 0
    %127 = vperm.xlu0 %126, %v117
    %v128 = vpop.permute.xlu0 %127
    %131 = vset.pattern.permute.xlu0 0
    %132 = vperm.xlu0 %131, %v118
    %v133 = vpop.permute.xlu0 %132
    %136 = vset.pattern.permute.xlu0 0
    %137 = vperm.xlu0 %136, %v119
    %v138 = vpop.permute.xlu0 %137
    %v140 = vld [vmem:[%s3 + $0x40] sm:$0xff]
    %v141 = vld [vmem:[%s3 + $0x48] sm:$0xff]
    %v142 = vld [vmem:[%s3 + $0x50] sm:$0xff]
    %v143 = vld [vmem:[%s3 + $0x58] sm:$0xff]
    %145 = vset.pattern.permute.xlu0 0
    %146 = vperm.xlu0 %145, %v140
    %v147 = vpop.permute.xlu0 %146
    %150 = vset.pattern.permute.xlu0 0
    %151 = vperm.xlu0 %150, %v141
    %v152 = vpop.permute.xlu0 %151
    %155 = vset.pattern.permute.xlu0 0
    %156 = vperm.xlu0 %155, %v142
    %v157 = vpop.permute.xlu0 %156
    %160 = vset.pattern.permute.xlu0 0
    %161 = vperm.xlu0 %160, %v143
    %v162 = vpop.permute.xlu0 %161
    %v164 = vld [vmem:[#allocation7] sm:$0x3]
    %v173 = vunpack.c.l.b16 %v59
    %v174 = vunpack.c.l.b16 %v60
    %v175 = vunpack.c.l.b16 %v61
    %v176 = vunpack.c.l.b16 %v62
    %v177 = vunpack.c.l.b16 %v63
    %v178 = vunpack.c.l.b16 %v64
    %v179 = vunpack.c.l.b16 %v65
    %v180 = vunpack.c.l.b16 %v66
    %v181 = vpack.c.b16 %v174, %v173
    %v182 = vpack.c.b16 %v176, %v175
    %v183 = vpack.c.b16 %v178, %v177
    %v184 = vpack.c.b16 %v180, %v179
    %vm185 = vcmask 31744
    %v187 = vsel %vm185, %v181, 0
    %v190 = vsel %vm185, %v182, 0
    %v193 = vsel %vm185, %v183, 0
    %v196 = vsel %vm185, %v184, 0
    %vm198 = vcmask 1041408
    %v200 = vsel %vm198, %v164, 0
    %202 = vmatpush.bf16.msra.mxu0 0
    %203 = vmatpush.bf16.msra.mxu0 0
    %204 = vmatpush.bf16.msra.mxu0 0
    %205 = vmatpush.bf16.msra.mxu0 0
    %206 = vmatpush.bf16.msra.mxu0 0
    %207 = vmatpush.bf16.msra.mxu0 0
    %208 = vmatpush.bf16.msra.mxu0 0
    %209 = vmatpush.bf16.msra.mxu0 %v200
    %210 = vmatmul.bf16.gmra.mxu0 %v187
    %v211 = vpop.f32.mrf.mxu0
    %v212 = vadd.f32 0.0, %v211
    %v213 = vpop.f32.mrf.mxu0
    %v214 = vadd.f32 0.0, %v213
    %215 = vmatmul.bf16.gmra.mxu0 %v190
    %v216 = vpop.f32.mrf.mxu0
    %v217 = vadd.f32 0.0, %v216
    %v218 = vpop.f32.mrf.mxu0
    %v219 = vadd.f32 0.0, %v218
    %220 = vmatmul.bf16.gmra.mxu0 %v193
    %v221 = vpop.f32.mrf.mxu0
    %v222 = vadd.f32 0.0, %v221
    %v223 = vpop.f32.mrf.mxu0
    %v224 = vadd.f32 0.0, %v223
    %225 = vmatmul.bf16.gmra.mxu0 %v196
    %v226 = vpop.f32.mrf.mxu0
    %v227 = vadd.f32 0.0, %v226
    %v228 = vpop.f32.mrf.mxu0
    %v229 = vadd.f32 0.0, %v228
    %230 = vdwg.mxu0
    %v231 = vmul.f32 %v212, %v212
    %v232 = vmul.f32 %v214, %v214
    %v233 = vmul.f32 %v217, %v217
    %v234 = vmul.f32 %v219, %v219
    %v235 = vadd.f32 %v231, %v222
    %v236 = vadd.f32 %v232, %v224
    %v237 = vadd.f32 %v233, %v227
    %v238 = vadd.f32 %v234, %v229
    %v239 = vadd.f32 %v235, %v99
    %v240 = vadd.f32 %v236, %v104
    %v241 = vadd.f32 %v237, %v109
    %v242 = vadd.f32 %v238, %v114
    %v251 = vunpack.c.l.b16 %v67
    %v252 = vunpack.c.l.b16 %v68
    %v253 = vunpack.c.l.b16 %v69
    %v254 = vunpack.c.l.b16 %v70
    %v255 = vunpack.c.l.b16 %v71
    %v256 = vunpack.c.l.b16 %v72
    %v257 = vunpack.c.l.b16 %v73
    %v258 = vunpack.c.l.b16 %v74
    %v259 = vpack.c.b16 %v252, %v251
    %v260 = vpack.c.b16 %v254, %v253
    %v261 = vpack.c.b16 %v256, %v255
    %v262 = vpack.c.b16 %v258, %v257
    %v264 = vsel %vm185, %v259, 0
    %v267 = vsel %vm185, %v260, 0
    %v270 = vsel %vm185, %v261, 0
    %v273 = vsel %vm185, %v262, 0
    %275 = vmatpush.bf16.msra.mxu0 0
    %276 = vmatpush.bf16.msra.mxu0 0
    %277 = vmatpush.bf16.msra.mxu0 0
    %278 = vmatpush.bf16.msra.mxu0 0
    %279 = vmatpush.bf16.msra.mxu0 0
    %280 = vmatpush.bf16.msra.mxu0 0
    %281 = vmatpush.bf16.msra.mxu0 0
    %282 = vmatpush.bf16.msra.mxu0 %v200
    %283 = vmatmul.bf16.gmra.mxu0 %v264
    %v284 = vpop.f32.mrf.mxu0
    %v285 = vadd.f32 0.0, %v284
    %v286 = vpop.f32.mrf.mxu0
    %v287 = vadd.f32 0.0, %v286
    %288 = vmatmul.bf16.gmra.mxu0 %v267
    %v289 = vpop.f32.mrf.mxu0
    %v290 = vadd.f32 0.0, %v289
    %v291 = vpop.f32.mrf.mxu0
    %v292 = vadd.f32 0.0, %v291
    %293 = vmatmul.bf16.gmra.mxu0 %v270
    %v294 = vpop.f32.mrf.mxu0
    %v295 = vadd.f32 0.0, %v294
    %v296 = vpop.f32.mrf.mxu0
    %v297 = vadd.f32 0.0, %v296
    %298 = vmatmul.bf16.gmra.mxu0 %v273
    %v299 = vpop.f32.mrf.mxu0
    %v300 = vadd.f32 0.0, %v299
    %v301 = vpop.f32.mrf.mxu0
    %v302 = vadd.f32 0.0, %v301
    %303 = vdwg.mxu0
    %v304 = vpack.c.bf16 %v240, %v239
    %v305 = vpack.c.bf16 %v242, %v241
    %v306 = vmul.f32 %v285, %v285
    %v307 = vmul.f32 %v287, %v287
    %v308 = vmul.f32 %v290, %v290
    %v309 = vmul.f32 %v292, %v292
    %v314 = vunpack.c.l.b16 %v83
    %v315 = vunpack.c.l.b16 %v84
    %v316 = vunpack.c.l.b16 %v85
    %v317 = vunpack.c.l.b16 %v86
    %v318 = vpack.c.b16 %v315, %v314
    %v319 = vpack.c.b16 %v317, %v316
    %vm320 = vcmask 261120
    %v322 = vsel %vm320, %v318, 0
    %v325 = vsel %vm320, %v319, 0
    %327 = vmatpush.bf16.msra.mxu0 0
    %328 = vmatpush.bf16.msra.mxu0 0
    %329 = vmatpush.bf16.msra.mxu0 0
    %330 = vmatpush.bf16.msra.mxu0 0
    %331 = vmatpush.bf16.msra.mxu0 0
    %332 = vmatpush.bf16.msra.mxu0 0
    %333 = vmatpush.bf16.msra.mxu0 %v305
    %334 = vmatpush.bf16.msra.mxu0 %v304
    %335 = vmatmul.bf16.gmra.mxu0 %v322
    %v336 = vpop.f32.mrf.mxu0
    %v337 = vadd.f32 %v306, %v336
    %v338 = vpop.f32.mrf.mxu0
    %v339 = vadd.f32 %v307, %v338
    %340 = vmatmul.bf16.gmra.mxu0 %v325
    %v341 = vpop.f32.mrf.mxu0
    %v342 = vadd.f32 %v308, %v341
    %v343 = vpop.f32.mrf.mxu0
    %v344 = vadd.f32 %v309, %v343
    %345 = vdwg.mxu0
    %v346 = vadd.f32 %v337, %v295
    %v347 = vadd.f32 %v339, %v297
    %v348 = vadd.f32 %v342, %v300
    %v349 = vadd.f32 %v344, %v302
    %v350 = vadd.f32 %v346, %v123
    %v351 = vadd.f32 %v347, %v128
    %v352 = vadd.f32 %v348, %v133
    %v353 = vadd.f32 %v349, %v138
    %vm354 = vcmp.gt.f32.partialorder %v350, 0.0
    %vm355 = vcmp.gt.f32.partialorder %v351, 0.0
    %vm356 = vcmp.gt.f32.partialorder %v352, 0.0
    %vm357 = vcmp.gt.f32.partialorder %v353, 0.0
    %v358 = vmul.f32 %v350, 1.442695
    %v359 = vpow.pop %v358
    %v360 = vmul.f32 %v351, 1.442695
    %v361 = vpow.pop %v360
    %v362 = vmul.f32 %v352, 1.442695
    %v363 = vpow.pop %v362
    %v364 = vmul.f32 %v353, 1.442695
    %v365 = vpow.pop %v364
    %v366 = vsub.f32 %v359, 1.0
    %v367 = vsub.f32 %v361, 1.0
    %v368 = vsub.f32 %v363, 1.0
    %v369 = vsub.f32 %v365, 1.0
    %v370 = vsel %vm354, %v350, %v366
    %v371 = vsel %vm355, %v351, %v367
    %v372 = vsel %vm356, %v352, %v368
    %v373 = vsel %vm357, %v353, %v369
    %v382 = vunpack.c.l.b16 %v75
    %v383 = vunpack.c.l.b16 %v76
    %v384 = vunpack.c.l.b16 %v77
    %v385 = vunpack.c.l.b16 %v78
    %v386 = vunpack.c.l.b16 %v79
    %v387 = vunpack.c.l.b16 %v80
    %v388 = vunpack.c.l.b16 %v81
    %v389 = vunpack.c.l.b16 %v82
    %v390 = vpack.c.b16 %v383, %v382
    %v391 = vpack.c.b16 %v385, %v384
    %v392 = vpack.c.b16 %v387, %v386
    %v393 = vpack.c.b16 %v389, %v388
    %v395 = vsel %vm185, %v390, 0
    %v398 = vsel %vm185, %v391, 0
    %v401 = vsel %vm185, %v392, 0
    %v404 = vsel %vm185, %v393, 0
    %406 = vmatpush.bf16.msra.mxu0 0
    %407 = vmatpush.bf16.msra.mxu0 0
    %408 = vmatpush.bf16.msra.mxu0 0
    %409 = vmatpush.bf16.msra.mxu0 0
    %410 = vmatpush.bf16.msra.mxu0 0
    %411 = vmatpush.bf16.msra.mxu0 0
    %412 = vmatpush.bf16.msra.mxu0 0
    %413 = vmatpush.bf16.msra.mxu0 %v200
    %414 = vmatmul.bf16.gmra.mxu0 %v395
    %v415 = vpop.f32.mrf.mxu0
    %v416 = vadd.f32 0.0, %v415
    %v417 = vpop.f32.mrf.mxu0
    %v418 = vadd.f32 0.0, %v417
    %419 = vmatmul.bf16.gmra.mxu0 %v398
    %v420 = vpop.f32.mrf.mxu0
    %v421 = vadd.f32 0.0, %v420
    %v422 = vpop.f32.mrf.mxu0
    %v423 = vadd.f32 0.0, %v422
    %424 = vmatmul.bf16.gmra.mxu0 %v401
    %v425 = vpop.f32.mrf.mxu0
    %v426 = vadd.f32 0.0, %v425
    %v427 = vpop.f32.mrf.mxu0
    %v428 = vadd.f32 0.0, %v427
    %429 = vmatmul.bf16.gmra.mxu0 %v404
    %v430 = vpop.f32.mrf.mxu0
    %v431 = vadd.f32 0.0, %v430
    %v432 = vpop.f32.mrf.mxu0
    %v433 = vadd.f32 0.0, %v432
    %434 = vdwg.mxu0
    %v435 = vpack.c.bf16 %v371, %v370
    %v436 = vpack.c.bf16 %v373, %v372
    %v437 = vmul.f32 %v416, %v416
    %v438 = vmul.f32 %v418, %v418
    %v439 = vmul.f32 %v421, %v421
    %v440 = vmul.f32 %v423, %v423
    %v445 = vunpack.c.l.b16 %v87
    %v446 = vunpack.c.l.b16 %v88
    %v447 = vunpack.c.l.b16 %v89
    %v448 = vunpack.c.l.b16 %v90
    %v449 = vpack.c.b16 %v446, %v445
    %v450 = vpack.c.b16 %v448, %v447
    %v452 = vsel %vm320, %v449, 0
    %v455 = vsel %vm320, %v450, 0
    %457 = vmatpush.bf16.msra.mxu0 0
    %458 = vmatpush.bf16.msra.mxu0 0
    %459 = vmatpush.bf16.msra.mxu0 0
    %460 = vmatpush.bf16.msra.mxu0 0
    %461 = vmatpush.bf16.msra.mxu0 0
    %462 = vmatpush.bf16.msra.mxu0 0
    %463 = vmatpush.bf16.msra.mxu0 %v436
    %464 = vmatpush.bf16.msra.mxu0 %v435
    %465 = vmatmul.bf16.gmra.mxu0 %v452
    %v466 = vpop.f32.mrf.mxu0
    %v467 = vadd.f32 %v437, %v466
    %v468 = vpop.f32.mrf.mxu0
    %v469 = vadd.f32 %v438, %v468
    %470 = vmatmul.bf16.gmra.mxu0 %v455
    %v471 = vpop.f32.mrf.mxu0
    %v472 = vadd.f32 %v439, %v471
    %v473 = vpop.f32.mrf.mxu0
    %v474 = vadd.f32 %v440, %v473
    %475 = vdwg.mxu0
    %v476 = vadd.f32 %v467, %v426
    %v477 = vadd.f32 %v469, %v428
    %v478 = vadd.f32 %v472, %v431
    %v479 = vadd.f32 %v474, %v433
    %v480 = vadd.f32 %v476, %v147
    %v481 = vadd.f32 %v477, %v152
    %v482 = vadd.f32 %v478, %v157
    %v483 = vadd.f32 %v479, %v162
    %vm484 = vcmp.gt.f32.partialorder %v480, 0.0
    %vm485 = vcmp.gt.f32.partialorder %v481, 0.0
    %vm486 = vcmp.gt.f32.partialorder %v482, 0.0
    %vm487 = vcmp.gt.f32.partialorder %v483, 0.0
    %v488 = vmul.f32 %v480, 1.442695
    %v489 = vpow.pop %v488
    %v490 = vmul.f32 %v481, 1.442695
    %v491 = vpow.pop %v490
    %v492 = vmul.f32 %v482, 1.442695
    %v493 = vpow.pop %v492
    %v494 = vmul.f32 %v483, 1.442695
    %v495 = vpow.pop %v494
    %v496 = vsub.f32 %v489, 1.0
    %v497 = vsub.f32 %v491, 1.0
    %v498 = vsub.f32 %v493, 1.0
    %v499 = vsub.f32 %v495, 1.0
    %v500 = vsel %vm484, %v480, %v496
    %v501 = vsel %vm485, %v481, %v497
    %v502 = vsel %vm486, %v482, %v498
    %v503 = vsel %vm487, %v483, %v499
    %v504 = vunpack.c.l.bf16 %v164
    %v505 = vmul.f32 %v504, %v504
    %vm506 = vcmask 1043456
    %v507 = vsel %vm506, %v505, 0.0
    %v508 = vrot.slane %v507, 4
    %v509 = vadd.f32 %v507, %v508
    %v510 = vrot.slane %v509, 2
    %v511 = vadd.f32 %v509, %v510
    %v512 = vrot.slane %v511, 1
    %v513 = vadd.f32 %v511, %v512
    %v514 = vmul.f32 %v513, 5e-07
    %v515 = vpack.c.bf16 %v501, %v500
    %v516 = vpack.c.bf16 %v503, %v502
    %v518 = vsel %vm320, %v91, 0
    %520 = vmatpush.bf16.msra.mxu0 0
    %521 = vmatpush.bf16.msra.mxu0 0
    %522 = vmatpush.bf16.msra.mxu0 0
    %523 = vmatpush.bf16.msra.mxu0 0
    %524 = vmatpush.bf16.msra.mxu0 0
    %525 = vmatpush.bf16.msra.mxu0 0
    %526 = vmatpush.bf16.msra.mxu0 %v516
    %527 = vmatpush.bf16.msra.mxu0 %v515
    %528 = vmatmul.bf16.gmra.mxu0 %v518
    %v529 = vpop.f32.mrf.mxu0
    %v530 = vadd.f32 %v514, %v529
    %v531 = vpop.f32.mrf.mxu0
    %532 = vdwg.mxu0
    %533 = vst [vmem:[%s9] sm:$0x1] %v530
    // Predicated region
    $region34: #{icnn_w2_forward.2} parent=1 // pred_check
      _
    $region35: #{icnn_w2_forward.2} parent=1 // pred_check_branch
      %535 = sbr.rel (0) target = $region37
    $region36: #{icnn_w2_forward.2} parent=1 // pred_region
      _
    $region37: #{icnn_w2_forward.2} parent=1 // pred_fallthru
      _
    // Predicated region
    $region38: #{icnn_w2_forward.2} parent=1 // pred_check
      _
    $region39: #{icnn_w2_forward.2} parent=1 // pred_check_branch
      %537 = sbr.rel (0) target = $region41
    $region40: #{icnn_w2_forward.2} parent=1 // pred_region
      _
    $region41: #{icnn_w2_forward.2} parent=1 // pred_fallthru
      _

</llo_original>
